<compile_context>
chip_gen: v6e
topology: v6e:2x2x1
jax: 0.10.0
libtpu: 0.0.40
codegen_flags: <defaults>
</compile_context>

<pallas_src>
import functools

import jax
import jax.numpy as jnp
from jax import lax
from jax.experimental import pallas as pl
from jax.experimental.pallas import tpu as pltpu

LANES = 128
_TINY_XLA_BYTES = 256 << 10      # below this, -jnp.mean(x) (fused XLA) wins
_FAST_PATH_BYTES = 2 << 20       # whole-slab-in-one-block threshold
_MIN_TILES_FOR_DUAL_CORE = 8     # dual-core split only pays off with enough tiles


def _cdiv(a: int, b: int) -> int:
    return -(-a // b)


def _default_target_block_bytes() -> int:
    """Per-generation streamed block size (2x double-buffered by BlockSpec)."""
    try:
        kind = jax.devices()[0].device_kind.lower()
    except Exception:
        return 4 << 20
    for tag in ("v2", "v3", "v4", "v5"):   # older gens: smaller scoped-VMEM budget
        if tag in kind:
            return 4 << 20
    return 8 << 20                          # v6e / v7x / newer


def _choose_tiling(rows: int, row_align: int, target_rows: int):
    """Pick (row_tile, num_tiles, num_cores) for the streamed path.

    Guarantees: row_tile % row_align == 0, row_tile <= ceil(rows/2) (so >= 2 tiles
    and the block never exceeds the array), and num_cores == 2 only when num_tiles
    is even (so there is never an out-of-range / duplicated grid step).
    """
    base = min(target_rows, _cdiv(rows, 2))
    base = max(row_align, base - base % row_align)
    num_tiles = _cdiv(rows, base)
    if num_tiles >= _MIN_TILES_FOR_DUAL_CORE:
        if num_tiles % 2 == 0:
            return base, num_tiles, 2
        # Nudge the tile up (<= ~15% bigger) so the count becomes even -> clean
        # dual-core split with no overhang iteration.
        cand = _cdiv(rows, num_tiles - 1)
        cand = _cdiv(cand, row_align) * row_align
        new_nt = _cdiv(rows, cand)
        if new_nt >= 2 and new_nt % 2 == 0:
            return cand, new_nt, 2
    return base, num_tiles, 1


def _small_sum_kernel(x_ref, o_ref, *, n_elements):
    """Whole array in one VMEM block: -sum(x)/N directly."""
    o_ref[0, 0] = -(jnp.sum(x_ref[...].astype(jnp.float32)) / jnp.float32(n_elements))


def _tiled_sum_kernel(x_ref, o_ref, acc_ref, *, rows, row_tile, num_tiles,
                      tiles_per_core):
    """Streamed partial-sum kernel.

    grid = (num_cores, tiles_per_core): axis 0 is 'parallel' (one chunk of tiles
    per TensorCore on v7x; a harmless outer loop on single-core chips), axis 1 is
    the 'arbitrary' reduction axis. Each core accumulates into a private (8, 128)
    f32 VMEM accumulator with elementwise VPU adds and emits its partial sum to
    o_ref[0, 0] on its last step. Every grid step maps to a distinct in-bounds
    tile, so there is no skip guard and no wasted DMA.
    """
    i = pl.program_id(0)   # parallel (core) axis
    j = pl.program_id(1)   # arbitrary (reduction) axis

    @pl.when(j == 0)
    def _init():
        acc_ref[...] = jnp.zeros_like(acc_ref)

    tile_linear = i * tiles_per_core + j

    def _accum(mask_rows):
        x = x_ref[...].astype(jnp.float32)
        if mask_rows:
            # Mask-first (select, no arithmetic) so garbage in the padded tail of
            # the partial last block can never propagate.
            row_ids = tile_linear * row_tile + lax.broadcasted_iota(
                jnp.int32, (row_tile, LANES), 0)
            x = jnp.where(row_ids < rows, x, 0.0)
        # Per-sublane-group partial sums: pure VPU adds (no cross-lane reduce),
        # fully hidden under the DMA of the next block.
        acc_ref[...] += jnp.sum(x.reshape(row_tile // 8, 8, LANES), axis=0)

    if rows % row_tile != 0:   # static: a ragged row tail exists
        # Only the single last real tile pays the iota/compare/select cost.
        @pl.when(tile_linear != num_tiles - 1)
        def _full_tiles():
            _accum(False)

        @pl.when(tile_linear == num_tiles - 1)
        def _ragged_tile():
            _accum(True)
    else:
        _accum(False)

    @pl.when(j == tiles_per_core - 1)
    def _finalize():
        o_ref[0, 0] = jnp.sum(acc_ref[...])   # single cross-lane reduce per core


def hinge_gan_loss_generator(discriminator_prediction_fake: jax.Array,
                             *, target_block_bytes: int | None = None) -> jax.Array:
    """Pallas implementation of HingeGANLossGenerator.forward: -mean(x)."""
    x = discriminator_prediction_fake
    n_elements = x.size
    orig_dtype = x.dtype
    # torch.mean keeps floating dtype; torch raises on integer inputs — here we
    # just return f32 for non-float inputs.
    out_dtype = orig_dtype if jnp.issubdtype(orig_dtype, jnp.floating) else jnp.float32
    itemsize = jnp.dtype(orig_dtype).itemsize

    if n_elements == 0:
        return jnp.full((), jnp.nan, out_dtype)

    # ---- Tiny path: typical GAN-generator-loss inputs. XLA's fused reduction is
    # as fast or faster here and stays fusable with surrounding loss math.
    if n_elements * itemsize <= _TINY_XLA_BYTES:
        return (-jnp.mean(x.astype(jnp.float32))).astype(out_dtype)

    flat = x.reshape(-1)
    if n_elements % LANES != 0:
        # Rare lane-ragged fallback only: pads < 128 trailing zeros (does not
        # change the sum). The common divisible case has no pad copy at all.
        flat = jnp.pad(flat, (0, (-n_elements) % LANES))
    rows = flat.size // LANES
    slab = flat.reshape(rows, LANES)
    slab_bytes = rows * LANES * itemsize

    # ---- Fast path: medium inputs -> one block, one grid step.
    if slab_bytes <= _FAST_PATH_BYTES:
        out = pl.pallas_call(
            functools.partial(_small_sum_kernel, n_elements=n_elements),
            out_shape=jax.ShapeDtypeStruct((1, 1), jnp.float32),
            grid_spec=pltpu.PrefetchScalarGridSpec(
                num_scalar_prefetch=0,
                grid=(1,),
                in_specs=[pl.BlockSpec((rows, LANES), lambda i: (0, 0))],
                out_specs=pl.BlockSpec((1, 1), lambda i: (0, 0),
                                       memory_space=pltpu.SMEM),
            ),
            compiler_params=pltpu.CompilerParams(
                dimension_semantics=("arbitrary",)),
        )(slab)
        return out[0, 0].astype(out_dtype)

    # ---- Large path: big streamed blocks (+ dual-core split when it pays off).
    if target_block_bytes is None:
        target_block_bytes = _default_target_block_bytes()
    # dtype-aware row alignment: 8 rows f32, 16 bf16/f16, 32 int8/fp8.
    row_align = 8 * max(1, 4 // itemsize)
    target_rows = max(row_align, target_block_bytes // (LANES * itemsize))
    row_tile, num_tiles, num_cores = _choose_tiling(rows, row_align, target_rows)
    tiles_per_core = num_tiles // num_cores

    # Explicit scoped-VMEM budget: 2x double-buffered input block + the f32 upcast
    # working set + headroom, so larger tiles compile on every generation.
    in_block_bytes = row_tile * LANES * itemsize
    vmem_limit = max(2 * in_block_bytes + row_tile * LANES * 4 + (4 << 20), 32 << 20)

    kernel = functools.partial(
        _tiled_sum_kernel, rows=rows, row_tile=row_tile,
        num_tiles=num_tiles, tiles_per_core=tiles_per_core)

    partials = pl.pallas_call(
        kernel,
        out_shape=jax.ShapeDtypeStruct((num_cores, 1), jnp.float32),
        grid_spec=pltpu.PrefetchScalarGridSpec(
            num_scalar_prefetch=0,
            grid=(num_cores, tiles_per_core),
            in_specs=[pl.BlockSpec((row_tile, LANES),
                                   lambda i, j: (i * tiles_per_core + j, 0))],
            out_specs=pl.BlockSpec((1, 1), lambda i, j: (i, 0),
                                   memory_space=pltpu.SMEM),
            scratch_shapes=[pltpu.VMEM((8, LANES), jnp.float32)],
        ),
        compiler_params=pltpu.CompilerParams(
            dimension_semantics=("parallel", "arbitrary"),
            vmem_limit_bytes=vmem_limit),
        cost_estimate=pl.CostEstimate(
            flops=n_elements, transcendentals=0,
            bytes_accessed=slab_bytes + 8 * num_cores),
    )(slab)

    total = jnp.sum(partials) if num_cores > 1 else partials[0, 0]
    loss = -(total / jnp.float32(n_elements))
    return loss.astype(out_dtype)


if __name__ == "__main__":
    key = jax.random.PRNGKey(0)
    ks = jax.random.split(key, 5)

    def check(name, ref, loss, rtol=1e-5, atol=1e-6):
        jax.block_until_ready(loss)
        assert jnp.allclose(loss, ref, rtol=rtol, atol=atol), (name, loss, ref)

    # 1) Typical tiny GAN-generator-loss input (NCHW patch output) -> XLA dispatch.
    x_tiny = jax.random.normal(ks[0], (2, 4, 16, 16), dtype=jnp.float32)
    check("tiny", -jnp.mean(x_tiny), hinge_gan_loss_generator(x_tiny))

    # 2) Medium input -> single-block Pallas fast path.
    x_med = jax.random.normal(ks[1], (2, 8, 128, 128), dtype=jnp.float32)
    check("medium", -jnp.mean(x_med), hinge_gan_loss_generator(x_med))

    # 3) Lane-ragged medium input (size % 128 != 0) -> pad fallback + fast path.
    x_rag = jax.random.normal(ks[2], (7, 97, 113), dtype=jnp.float32)
    check("lane_ragged", -jnp.mean(x_rag), hinge_gan_loss_generator(x_rag))

    # 4) Larger input -> streamed path (two big tiles, 1-D reduction grid).
    x_big = jax.random.normal(ks[3], (2, 4, 288, 512), dtype=jnp.float32)
    check("streamed", -jnp.mean(x_big), hinge_gan_loss_generator(x_big))

    # 5) Same data, small forced block size -> odd tile count nudged to even,
    #    dual-core 2-D grid, ragged last tile handled by the gated mask branch.
    check("streamed_dualcore_ragged", -jnp.mean(x_big),
          hinge_gan_loss_generator(x_big, target_block_bytes=320 << 10))

    # 6) bf16 streamed input (row_align=16, f32 accumulate, bf16 result).
    x_bf16 = x_big.astype(jnp.bfloat16)
    ref_bf16 = (-jnp.mean(x_bf16.astype(jnp.float32))).astype(jnp.bfloat16)
    check("streamed_bf16", ref_bf16,
          hinge_gan_loss_generator(x_bf16, target_block_bytes=320 << 10),
          rtol=1e-2, atol=1e-2)

    print("KERNEL_OK")
</pallas_src>

<mosaic_0001>
module attributes {stable_mosaic.version = 11 : i64} {
  func.func @_small_sum_kernel(%arg0: i32, %arg1: memref<2048x128xf32, #tpu.memory_space<vmem>>, %arg2: memref<1x1xf32, #tpu.memory_space<smem>>) attributes {dimension_semantics = [#tpu.dimension_semantics<arbitrary>], iteration_bounds = array<i64: 1>, scalar_prefetch = 0 : i64, scratch_operands = 0 : i64, tpu.core_type = #tpu.core_type<tc>, window_params = [{pipeline_mode = #tpu.pipeline_mode<synchronous>, transform_indices = @transform_0, window_bounds = array<i64: 2048, 128>}, {transform_indices = @transform_1, window_bounds = array<i64: 1, 1>}]} {
    %c0 = arith.constant 0 : index
    %c0_0 = arith.constant 0 : index
    %0 = vector.load %arg1[%c0, %c0_0] : memref<2048x128xf32, #tpu.memory_space<vmem>>, vector<2048x128xf32>
    %1 = vector.shape_cast %0 : vector<2048x128xf32> to vector<1x2048x128xf32>
    %cst = arith.constant dense<0.000000e+00> : vector<1xf32>
    %2 = vector.multi_reduction <add>, %1, %cst [1, 2] : vector<1x2048x128xf32> to vector<1xf32>
    %3 = vector.shape_cast %2 : vector<1xf32> to vector<1x1x1xf32>
    %4 = vector.extract %3[0, 0, 0] : f32 from vector<1x1x1xf32>
    %cst_1 = arith.constant 2.621440e+05 : f32
    %5 = arith.divf %4, %cst_1 : f32
    %cst_2 = arith.constant 0.000000e+00 : f32
    %6 = arith.subf %cst_2, %5 : f32
    %c0_3 = arith.constant 0 : index
    %c0_4 = arith.constant 0 : index
    %7 = memref.load %arg2[%c0_3, %c0_4] : memref<1x1xf32, #tpu.memory_space<smem>>
    memref.store %6, %arg2[%c0_3, %c0_4] : memref<1x1xf32, #tpu.memory_space<smem>>
    return
  }
  func.func @transform_0(%arg0: i32) -> (i32, i32) {
    %c0_i32 = arith.constant 0 : i32
    %c0_i32_0 = arith.constant 0 : i32
    %c0_i32_1 = arith.constant 0 : i32
    return %c0_i32, %c0_i32_0 : i32, i32
  }
  func.func @transform_1(%arg0: i32) -> (i32, i32) {
    %c0_i32 = arith.constant 0 : i32
    %c0_i32_0 = arith.constant 0 : i32
    %c0_i32_1 = arith.constant 0 : i32
    return %c0_i32, %c0_i32_0 : i32, i32
  }
}

</mosaic_0001>

<llo_original>
// kernel: tpu_custom_call.1
$region0: #{tpu_custom_call.1}
  #allocation0 [shape = 'u32[]', space=smem, size = 0x4, offset = 0x4, fixed_abs, tag = 'smem constant byte address 0x4 - core index']
  #allocation1 [shape = 'u32[144,128]{1,0:T(1,128)}', space=vmem, size = 0x12000, scoped, tag = 'internal scratch']
  %s0 = inlined_call_operand.hbm [shape: f32[2048,128], index: 0, kind: input, shape index: {}]
  %s1 = inlined_call_operand.hbm [shape: f32[1,1], index: 1, kind: output, shape index: {}]
  %s2 = sld [smem:[#allocation0]]
  $region18: #{tpu_custom_call.1} parent=0
    _
  %s4 = ssub.s32 1, %s2
  %s5 = scalar_select 0, %s4, %s2
  $region1: #{tpu_custom_call.1} parent=0
    #allocation2 [shape = 'u8[1048576]{0}', space=vmem, size = 0x100000, scoped, tag = 'input window, operand 0, single buffered']
    #allocation3 [shape = 's32[1]{0}', space=sflag, size = 0x4, scoped, tag = 'scoped memory for tpu_custom_call.1']
    #allocation4 [shape = 's32[1]{0}', space=sflag, size = 0x4, scoped, tag = 'scoped memory for tpu_custom_call.1']
    #allocation5 [shape = 'u8[512]{0}', space=smem, size = 0x200, scoped, tag = 'output window, operand 0, single buffered']
    %6 = vsyncpa [#allocation3], 0
    %7 = vsyncpa [#allocation4], 0
    // Predicated region
    $region2: #{tpu_custom_call.1} parent=1 // pred_check
      _
    $region3: #{tpu_custom_call.1} parent=1 // pred_check_branch
      %9 = sbr.rel (0) target = $region5
    $region4: #{tpu_custom_call.1} parent=1 // pred_region
      %s11 = ssub.s32 32768, 32768
      %12 = vsyncadd [#allocation3], %s11
      %s13 = sshll.u32 [#allocation2], 4
      %s14 = int_to_ptr.vmem [resolvable:$true] %s13
      %19 = dma.hbm_to_vmem [thread:$0]  %s0, 32768, %s14, [#allocation3], 128, 128, 8
    $region5: #{tpu_custom_call.1} parent=1 // pred_fallthru
      _
    // Predicated region
    $region6: #{tpu_custom_call.1} parent=1 // pred_check
      _
    $region7: #{tpu_custom_call.1} parent=1 // pred_check_branch
      %21 = sbr.rel (0) target = $region9
    $region8: #{tpu_custom_call.1} parent=1 // pred_region
      %22 = dma.done [#allocation3], 32768
    $region9: #{tpu_custom_call.1} parent=1 // pred_fallthru
      _
    %v23 = vld [vmem:[#allocation2] sm:$0xff]
    %v24 = vld [vmem:[#allocation2 + $0x8] sm:$0xff]
    %v25 = vld [vmem:[#allocation2 + $0x10] sm:$0xff]
    %v26 = vld [vmem:[#allocation2 + $0x18] sm:$0xff]
    %v27 = vld [vmem:[#allocation2 + $0x20] sm:$0xff]
    %v28 = vld [vmem:[#allocation2 + $0x28] sm:$0xff]
    %v29 = vld [vmem:[#allocation2 + $0x30] sm:$0xff]
    %v30 = vld [vmem:[#allocation2 + $0x38] sm:$0xff]
    %v31 = vld [vmem:[#allocation2 + $0x40] sm:$0xff]
    %v32 = vld [vmem:[#allocation2 + $0x48] sm:$0xff]
    %v33 = vld [vmem:[#allocation2 + $0x50] sm:$0xff]
    %v34 = vld [vmem:[#allocation2 + $0x58] sm:$0xff]
    %v35 = vld [vmem:[#allocation2 + $0x60] sm:$0xff]
    %v36 = vld [vmem:[#allocation2 + $0x68] sm:$0xff]
    %v37 = vld [vmem:[#allocation2 + $0x70] sm:$0xff]
    %v38 = vld [vmem:[#allocation2 + $0x78] sm:$0xff]
    %v39 = vld [vmem:[#allocation2 + $0x80] sm:$0xff]
    %v40 = vld [vmem:[#allocation2 + $0x88] sm:$0xff]
    %v41 = vld [vmem:[#allocation2 + $0x90] sm:$0xff]
    %v42 = vld [vmem:[#allocation2 + $0x98] sm:$0xff]
    %v43 = vld [vmem:[#allocation2 + $0xa0] sm:$0xff]
    %v44 = vld [vmem:[#allocation2 + $0xa8] sm:$0xff]
    %v45 = vld [vmem:[#allocation2 + $0xb0] sm:$0xff]
    %v46 = vld [vmem:[#allocation2 + $0xb8] sm:$0xff]
    %v47 = vld [vmem:[#allocation2 + $0xc0] sm:$0xff]
    %v48 = vld [vmem:[#allocation2 + $0xc8] sm:$0xff]
    %v49 = vld [vmem:[#allocation2 + $0xd0] sm:$0xff]
    %v50 = vld [vmem:[#allocation2 + $0xd8] sm:$0xff]
    %v51 = vld [vmem:[#allocation2 + $0xe0] sm:$0xff]
    %v52 = vld [vmem:[#allocation2 + $0xe8] sm:$0xff]
    %v53 = vld [vmem:[#allocation2 + $0xf0] sm:$0xff]
    %v54 = vld [vmem:[#allocation2 + $0xf8] sm:$0xff]
    %v55 = vld [vmem:[#allocation2 + $0x100] sm:$0xff]
    %v56 = vld [vmem:[#allocation2 + $0x108] sm:$0xff]
    %v57 = vld [vmem:[#allocation2 + $0x110] sm:$0xff]
    %v58 = vld [vmem:[#allocation2 + $0x118] sm:$0xff]
    %v59 = vld [vmem:[#allocation2 + $0x120] sm:$0xff]
    %v60 = vld [vmem:[#allocation2 + $0x128] sm:$0xff]
    %v61 = vld [vmem:[#allocation2 + $0x130] sm:$0xff]
    %v62 = vld [vmem:[#allocation2 + $0x138] sm:$0xff]
    %v63 = vld [vmem:[#allocation2 + $0x140] sm:$0xff]
    %v64 = vld [vmem:[#allocation2 + $0x148] sm:$0xff]
    %v65 = vld [vmem:[#allocation2 + $0x150] sm:$0xff]
    %v66 = vld [vmem:[#allocation2 + $0x158] sm:$0xff]
    %v67 = vld [vmem:[#allocation2 + $0x160] sm:$0xff]
    %v68 = vld [vmem:[#allocation2 + $0x168] sm:$0xff]
    %v69 = vld [vmem:[#allocation2 + $0x170] sm:$0xff]
    %v70 = vld [vmem:[#allocation2 + $0x178] sm:$0xff]
    %v71 = vld [vmem:[#allocation2 + $0x180] sm:$0xff]
    %v72 = vld [vmem:[#allocation2 + $0x188] sm:$0xff]
    %v73 = vld [vmem:[#allocation2 + $0x190] sm:$0xff]
    %v74 = vld [vmem:[#allocation2 + $0x198] sm:$0xff]
    %v75 = vld [vmem:[#allocation2 + $0x1a0] sm:$0xff]
    %v76 = vld [vmem:[#allocation2 + $0x1a8] sm:$0xff]
    %v77 = vld [vmem:[#allocation2 + $0x1b0] sm:$0xff]
    %v78 = vld [vmem:[#allocation2 + $0x1b8] sm:$0xff]
    %v79 = vld [vmem:[#allocation2 + $0x1c0] sm:$0xff]
    %v80 = vld [vmem:[#allocation2 + $0x1c8] sm:$0xff]
    %v81 = vld [vmem:[#allocation2 + $0x1d0] sm:$0xff]
    %v82 = vld [vmem:[#allocation2 + $0x1d8] sm:$0xff]
    %v83 = vld [vmem:[#allocation2 + $0x1e0] sm:$0xff]
    %v84 = vld [vmem:[#allocation2 + $0x1e8] sm:$0xff]
    %v85 = vld [vmem:[#allocation2 + $0x1f0] sm:$0xff]
    %v86 = vld [vmem:[#allocation2 + $0x1f8] sm:$0xff]
    %v87 = vld [vmem:[#allocation2 + $0x200] sm:$0xff]
    %v88 = vld [vmem:[#allocation2 + $0x208] sm:$0xff]
    %v89 = vld [vmem:[#allocation2 + $0x210] sm:$0xff]
    %v90 = vld [vmem:[#allocation2 + $0x218] sm:$0xff]
    %v91 = vld [vmem:[#allocation2 + $0x220] sm:$0xff]
    %v92 = vld [vmem:[#allocation2 + $0x228] sm:$0xff]
    %v93 = vld [vmem:[#allocation2 + $0x230] sm:$0xff]
    %v94 = vld [vmem:[#allocation2 + $0x238] sm:$0xff]
    %v95 = vld [vmem:[#allocation2 + $0x240] sm:$0xff]
    %v96 = vld [vmem:[#allocation2 + $0x248] sm:$0xff]
    %v97 = vld [vmem:[#allocation2 + $0x250] sm:$0xff]
    %v98 = vld [vmem:[#allocation2 + $0x258] sm:$0xff]
    %v99 = vld [vmem:[#allocation2 + $0x260] sm:$0xff]
    %v100 = vld [vmem:[#allocation2 + $0x268] sm:$0xff]
    %v101 = vld [vmem:[#allocation2 + $0x270] sm:$0xff]
    %v102 = vld [vmem:[#allocation2 + $0x278] sm:$0xff]
    %v103 = vld [vmem:[#allocation2 + $0x280] sm:$0xff]
    %v104 = vld [vmem:[#allocation2 + $0x288] sm:$0xff]
    %v105 = vld [vmem:[#allocation2 + $0x290] sm:$0xff]
    %v106 = vld [vmem:[#allocation2 + $0x298] sm:$0xff]
    %v107 = vld [vmem:[#allocation2 + $0x2a0] sm:$0xff]
    %v108 = vld [vmem:[#allocation2 + $0x2a8] sm:$0xff]
    %v109 = vld [vmem:[#allocation2 + $0x2b0] sm:$0xff]
    %v110 = vld [vmem:[#allocation2 + $0x2b8] sm:$0xff]
    %v111 = vld [vmem:[#allocation2 + $0x2c0] sm:$0xff]
    %v112 = vld [vmem:[#allocation2 + $0x2c8] sm:$0xff]
    %v113 = vld [vmem:[#allocation2 + $0x2d0] sm:$0xff]
    %v114 = vld [vmem:[#allocation2 + $0x2d8] sm:$0xff]
    %v115 = vld [vmem:[#allocation2 + $0x2e0] sm:$0xff]
    %v116 = vld [vmem:[#allocation2 + $0x2e8] sm:$0xff]
    %v117 = vld [vmem:[#allocation2 + $0x2f0] sm:$0xff]
    %v118 = vld [vmem:[#allocation2 + $0x2f8] sm:$0xff]
    %v119 = vld [vmem:[#allocation2 + $0x300] sm:$0xff]
    %v120 = vld [vmem:[#allocation2 + $0x308] sm:$0xff]
    %v121 = vld [vmem:[#allocation2 + $0x310] sm:$0xff]
    %v122 = vld [vmem:[#allocation2 + $0x318] sm:$0xff]
    %v123 = vld [vmem:[#allocation2 + $0x320] sm:$0xff]
    %v124 = vld [vmem:[#allocation2 + $0x328] sm:$0xff]
    %v125 = vld [vmem:[#allocation2 + $0x330] sm:$0xff]
    %v126 = vld [vmem:[#allocation2 + $0x338] sm:$0xff]
    %v127 = vld [vmem:[#allocation2 + $0x340] sm:$0xff]
    %v128 = vld [vmem:[#allocation2 + $0x348] sm:$0xff]
    %v129 = vld [vmem:[#allocation2 + $0x350] sm:$0xff]
    %v130 = vld [vmem:[#allocation2 + $0x358] sm:$0xff]
    %v131 = vld [vmem:[#allocation2 + $0x360] sm:$0xff]
    %v132 = vld [vmem:[#allocation2 + $0x368] sm:$0xff]
    %v133 = vld [vmem:[#allocation2 + $0x370] sm:$0xff]
    %v134 = vld [vmem:[#allocation2 + $0x378] sm:$0xff]
    %v135 = vld [vmem:[#allocation2 + $0x380] sm:$0xff]
    %v136 = vld [vmem:[#allocation2 + $0x388] sm:$0xff]
    %v137 = vld [vmem:[#allocation2 + $0x390] sm:$0xff]
    %v138 = vld [vmem:[#allocation2 + $0x398] sm:$0xff]
    %v139 = vld [vmem:[#allocation2 + $0x3a0] sm:$0xff]
    %v140 = vld [vmem:[#allocation2 + $0x3a8] sm:$0xff]
    %v141 = vld [vmem:[#allocation2 + $0x3b0] sm:$0xff]
    %v142 = vld [vmem:[#allocation2 + $0x3b8] sm:$0xff]
    %v143 = vld [vmem:[#allocation2 + $0x3c0] sm:$0xff]
    %v144 = vld [vmem:[#allocation2 + $0x3c8] sm:$0xff]
    %v145 = vld [vmem:[#allocation2 + $0x3d0] sm:$0xff]
    %v146 = vld [vmem:[#allocation2 + $0x3d8] sm:$0xff]
    %v147 = vld [vmem:[#allocation2 + $0x3e0] sm:$0xff]
    %v148 = vld [vmem:[#allocation2 + $0x3e8] sm:$0xff]
    %v149 = vld [vmem:[#allocation2 + $0x3f0] sm:$0xff]
    %v150 = vld [vmem:[#allocation2 + $0x3f8] sm:$0xff]
    %v151 = vld [vmem:[#allocation2 + $0x400] sm:$0xff]
    %v152 = vld [vmem:[#allocation2 + $0x408] sm:$0xff]
    %v153 = vld [vmem:[#allocation2 + $0x410] sm:$0xff]
    %v154 = vld [vmem:[#allocation2 + $0x418] sm:$0xff]
    %v155 = vld [vmem:[#allocation2 + $0x420] sm:$0xff]
    %v156 = vld [vmem:[#allocation2 + $0x428] sm:$0xff]
    %v157 = vld [vmem:[#allocation2 + $0x430] sm:$0xff]
    %v158 = vld [vmem:[#allocation2 + $0x438] sm:$0xff]
    %v159 = vld [vmem:[#allocation2 + $0x440] sm:$0xff]
    %v160 = vld [vmem:[#allocation2 + $0x448] sm:$0xff]
    %v161 = vld [vmem:[#allocation2 + $0x450] sm:$0xff]
    %v162 = vld [vmem:[#allocation2 + $0x458] sm:$0xff]
    %v163 = vld [vmem:[#allocation2 + $0x460] sm:$0xff]
    %v164 = vld [vmem:[#allocation2 + $0x468] sm:$0xff]
    %v165 = vld [vmem:[#allocation2 + $0x470] sm:$0xff]
    %v166 = vld [vmem:[#allocation2 + $0x478] sm:$0xff]
    %v167 = vld [vmem:[#allocation2 + $0x480] sm:$0xff]
    %v168 = vld [vmem:[#allocation2 + $0x488] sm:$0xff]
    %v169 = vld [vmem:[#allocation2 + $0x490] sm:$0xff]
    %v170 = vld [vmem:[#allocation2 + $0x498] sm:$0xff]
    %v171 = vld [vmem:[#allocation2 + $0x4a0] sm:$0xff]
    %v172 = vld [vmem:[#allocation2 + $0x4a8] sm:$0xff]
    %v173 = vld [vmem:[#allocation2 + $0x4b0] sm:$0xff]
    %v174 = vld [vmem:[#allocation2 + $0x4b8] sm:$0xff]
    %v175 = vld [vmem:[#allocation2 + $0x4c0] sm:$0xff]
    %v176 = vld [vmem:[#allocation2 + $0x4c8] sm:$0xff]
    %v177 = vld [vmem:[#allocation2 + $0x4d0] sm:$0xff]
    %v178 = vld [vmem:[#allocation2 + $0x4d8] sm:$0xff]
    %v179 = vld [vmem:[#allocation2 + $0x4e0] sm:$0xff]
    %v180 = vld [vmem:[#allocation2 + $0x4e8] sm:$0xff]
    %v181 = vld [vmem:[#allocation2 + $0x4f0] sm:$0xff]
    %v182 = vld [vmem:[#allocation2 + $0x4f8] sm:$0xff]
    %v183 = vld [vmem:[#allocation2 + $0x500] sm:$0xff]
    %v184 = vld [vmem:[#allocation2 + $0x508] sm:$0xff]
    %v185 = vld [vmem:[#allocation2 + $0x510] sm:$0xff]
    %v186 = vld [vmem:[#allocation2 + $0x518] sm:$0xff]
    %v187 = vld [vmem:[#allocation2 + $0x520] sm:$0xff]
    %v188 = vld [vmem:[#allocation2 + $0x528] sm:$0xff]
    %v189 = vld [vmem:[#allocation2 + $0x530] sm:$0xff]
    %v190 = vld [vmem:[#allocation2 + $0x538] sm:$0xff]
    %v191 = vld [vmem:[#allocation2 + $0x540] sm:$0xff]
    %v192 = vld [vmem:[#allocation2 + $0x548] sm:$0xff]
    %v193 = vld [vmem:[#allocation2 + $0x550] sm:$0xff]
    %v194 = vld [vmem:[#allocation2 + $0x558] sm:$0xff]
    %v195 = vld [vmem:[#allocation2 + $0x560] sm:$0xff]
    %v196 = vld [vmem:[#allocation2 + $0x568] sm:$0xff]
    %v197 = vld [vmem:[#allocation2 + $0x570] sm:$0xff]
    %v198 = vld [vmem:[#allocation2 + $0x578] sm:$0xff]
    %v199 = vld [vmem:[#allocation2 + $0x580] sm:$0xff]
    %v200 = vld [vmem:[#allocation2 + $0x588] sm:$0xff]
    %v201 = vld [vmem:[#allocation2 + $0x590] sm:$0xff]
    %v202 = vld [vmem:[#allocation2 + $0x598] sm:$0xff]
    %v203 = vld [vmem:[#allocation2 + $0x5a0] sm:$0xff]
    %v204 = vld [vmem:[#allocation2 + $0x5a8] sm:$0xff]
    %v205 = vld [vmem:[#allocation2 + $0x5b0] sm:$0xff]
    %v206 = vld [vmem:[#allocation2 + $0x5b8] sm:$0xff]
    %v207 = vld [vmem:[#allocation2 + $0x5c0] sm:$0xff]
    %v208 = vld [vmem:[#allocation2 + $0x5c8] sm:$0xff]
    %v209 = vld [vmem:[#allocation2 + $0x5d0] sm:$0xff]
    %v210 = vld [vmem:[#allocation2 + $0x5d8] sm:$0xff]
    %v211 = vld [vmem:[#allocation2 + $0x5e0] sm:$0xff]
    %v212 = vld [vmem:[#allocation2 + $0x5e8] sm:$0xff]
    %v213 = vld [vmem:[#allocation2 + $0x5f0] sm:$0xff]
    %v214 = vld [vmem:[#allocation2 + $0x5f8] sm:$0xff]
    %v215 = vld [vmem:[#allocation2 + $0x600] sm:$0xff]
    %v216 = vld [vmem:[#allocation2 + $0x608] sm:$0xff]
    %v217 = vld [vmem:[#allocation2 + $0x610] sm:$0xff]
    %v218 = vld [vmem:[#allocation2 + $0x618] sm:$0xff]
    %v219 = vld [vmem:[#allocation2 + $0x620] sm:$0xff]
    %v220 = vld [vmem:[#allocation2 + $0x628] sm:$0xff]
    %v221 = vld [vmem:[#allocation2 + $0x630] sm:$0xff]
    %v222 = vld [vmem:[#allocation2 + $0x638] sm:$0xff]
    %v223 = vld [vmem:[#allocation2 + $0x640] sm:$0xff]
    %v224 = vld [vmem:[#allocation2 + $0x648] sm:$0xff]
    %v225 = vld [vmem:[#allocation2 + $0x650] sm:$0xff]
    %v226 = vld [vmem:[#allocation2 + $0x658] sm:$0xff]
    %v227 = vld [vmem:[#allocation2 + $0x660] sm:$0xff]
    %v228 = vld [vmem:[#allocation2 + $0x668] sm:$0xff]
    %v229 = vld [vmem:[#allocation2 + $0x670] sm:$0xff]
    %v230 = vld [vmem:[#allocation2 + $0x678] sm:$0xff]
    %v231 = vld [vmem:[#allocation2 + $0x680] sm:$0xff]
    %v232 = vld [vmem:[#allocation2 + $0x688] sm:$0xff]
    %v233 = vld [vmem:[#allocation2 + $0x690] sm:$0xff]
    %v234 = vld [vmem:[#allocation2 + $0x698] sm:$0xff]
    %v235 = vld [vmem:[#allocation2 + $0x6a0] sm:$0xff]
    %v236 = vld [vmem:[#allocation2 + $0x6a8] sm:$0xff]
    %v237 = vld [vmem:[#allocation2 + $0x6b0] sm:$0xff]
    %v238 = vld [vmem:[#allocation2 + $0x6b8] sm:$0xff]
    %v239 = vld [vmem:[#allocation2 + $0x6c0] sm:$0xff]
    %v240 = vld [vmem:[#allocation2 + $0x6c8] sm:$0xff]
    %v241 = vld [vmem:[#allocation2 + $0x6d0] sm:$0xff]
    %v242 = vld [vmem:[#allocation2 + $0x6d8] sm:$0xff]
    %v243 = vld [vmem:[#allocation2 + $0x6e0] sm:$0xff]
    %v244 = vld [vmem:[#allocation2 + $0x6e8] sm:$0xff]
    %v245 = vld [vmem:[#allocation2 + $0x6f0] sm:$0xff]
    %v246 = vld [vmem:[#allocation2 + $0x6f8] sm:$0xff]
    %v247 = vld [vmem:[#allocation2 + $0x700] sm:$0xff]
    %v248 = vld [vmem:[#allocation2 + $0x708] sm:$0xff]
    %v249 = vld [vmem:[#allocation2 + $0x710] sm:$0xff]
    %v250 = vld [vmem:[#allocation2 + $0x718] sm:$0xff]
    %v251 = vld [vmem:[#allocation2 + $0x720] sm:$0xff]
    %v252 = vld [vmem:[#allocation2 + $0x728] sm:$0xff]
    %v253 = vld [vmem:[#allocation2 + $0x730] sm:$0xff]
    %v254 = vld [vmem:[#allocation2 + $0x738] sm:$0xff]
    %v255 = vld [vmem:[#allocation2 + $0x740] sm:$0xff]
    %v256 = vld [vmem:[#allocation2 + $0x748] sm:$0xff]
    %v257 = vld [vmem:[#allocation2 + $0x750] sm:$0xff]
    %v258 = vld [vmem:[#allocation2 + $0x758] sm:$0xff]
    %v259 = vld [vmem:[#allocation2 + $0x760] sm:$0xff]
    %v260 = vld [vmem:[#allocation2 + $0x768] sm:$0xff]
    %v261 = vld [vmem:[#allocation2 + $0x770] sm:$0xff]
    %v262 = vld [vmem:[#allocation2 + $0x778] sm:$0xff]
    %v263 = vld [vmem:[#allocation2 + $0x780] sm:$0xff]
    %v264 = vld [vmem:[#allocation2 + $0x788] sm:$0xff]
    %v265 = vld [vmem:[#allocation2 + $0x790] sm:$0xff]
    %v266 = vld [vmem:[#allocation2 + $0x798] sm:$0xff]
    %v267 = vld [vmem:[#allocation2 + $0x7a0] sm:$0xff]
    %v268 = vld [vmem:[#allocation2 + $0x7a8] sm:$0xff]
    %v269 = vld [vmem:[#allocation2 + $0x7b0] sm:$0xff]
    %v270 = vld [vmem:[#allocation2 + $0x7b8] sm:$0xff]
    %v271 = vld [vmem:[#allocation2 + $0x7c0] sm:$0xff]
    %v272 = vld [vmem:[#allocation2 + $0x7c8] sm:$0xff]
    %v273 = vld [vmem:[#allocation2 + $0x7d0] sm:$0xff]
    %v274 = vld [vmem:[#allocation2 + $0x7d8] sm:$0xff]
    %v275 = vld [vmem:[#allocation2 + $0x7e0] sm:$0xff]
    %v276 = vld [vmem:[#allocation2 + $0x7e8] sm:$0xff]
    %v277 = vld [vmem:[#allocation2 + $0x7f0] sm:$0xff]
    %v278 = vld [vmem:[#allocation2 + $0x7f8] sm:$0xff]
    %v279 = vadd.f32 %v23, %v24
    %v280 = vadd.f32 %v279, %v25
    %v281 = vadd.f32 %v280, %v26
    %v282 = vadd.f32 %v281, %v27
    %v283 = vadd.f32 %v282, %v28
    %v284 = vadd.f32 %v283, %v29
    %v285 = vadd.f32 %v284, %v30
    %v286 = vadd.f32 %v285, %v31
    %v287 = vadd.f32 %v286, %v32
    %v288 = vadd.f32 %v287, %v33
    %v289 = vadd.f32 %v288, %v34
    %v290 = vadd.f32 %v289, %v35
    %v291 = vadd.f32 %v290, %v36
    %v292 = vadd.f32 %v291, %v37
    %v293 = vadd.f32 %v292, %v38
    %v294 = vadd.f32 %v293, %v39
    %v295 = vadd.f32 %v294, %v40
    %v296 = vadd.f32 %v295, %v41
    %v297 = vadd.f32 %v296, %v42
    %v298 = vadd.f32 %v297, %v43
    %v299 = vadd.f32 %v298, %v44
    %v300 = vadd.f32 %v299, %v45
    %v301 = vadd.f32 %v300, %v46
    %v302 = vadd.f32 %v301, %v47
    %v303 = vadd.f32 %v302, %v48
    %v304 = vadd.f32 %v303, %v49
    %v305 = vadd.f32 %v304, %v50
    %v306 = vadd.f32 %v305, %v51
    %v307 = vadd.f32 %v306, %v52
    %v308 = vadd.f32 %v307, %v53
    %v309 = vadd.f32 %v308, %v54
    %v310 = vadd.f32 %v309, %v55
    %v311 = vadd.f32 %v310, %v56
    %v312 = vadd.f32 %v311, %v57
    %v313 = vadd.f32 %v312, %v58
    %v314 = vadd.f32 %v313, %v59
    %v315 = vadd.f32 %v314, %v60
    %v316 = vadd.f32 %v315, %v61
    %v317 = vadd.f32 %v316, %v62
    %v318 = vadd.f32 %v317, %v63
    %v319 = vadd.f32 %v318, %v64
    %v320 = vadd.f32 %v319, %v65
    %v321 = vadd.f32 %v320, %v66
    %v322 = vadd.f32 %v321, %v67
    %v323 = vadd.f32 %v322, %v68
    %v324 = vadd.f32 %v323, %v69
    %v325 = vadd.f32 %v324, %v70
    %v326 = vadd.f32 %v325, %v71
    %v327 = vadd.f32 %v326, %v72
    %v328 = vadd.f32 %v327, %v73
    %v329 = vadd.f32 %v328, %v74
    %v330 = vadd.f32 %v329, %v75
    %v331 = vadd.f32 %v330, %v76
    %v332 = vadd.f32 %v331, %v77
    %v333 = vadd.f32 %v332, %v78
    %v334 = vadd.f32 %v333, %v79
    %v335 = vadd.f32 %v334, %v80
    %v336 = vadd.f32 %v335, %v81
    %v337 = vadd.f32 %v336, %v82
    %v338 = vadd.f32 %v337, %v83
    %v339 = vadd.f32 %v338, %v84
    %v340 = vadd.f32 %v339, %v85
    %v341 = vadd.f32 %v340, %v86
    %v342 = vadd.f32 %v341, %v87
    %v343 = vadd.f32 %v342, %v88
    %v344 = vadd.f32 %v343, %v89
    %v345 = vadd.f32 %v344, %v90
    %v346 = vadd.f32 %v345, %v91
    %v347 = vadd.f32 %v346, %v92
    %v348 = vadd.f32 %v347, %v93
    %v349 = vadd.f32 %v348, %v94
    %v350 = vadd.f32 %v349, %v95
    %v351 = vadd.f32 %v350, %v96
    %v352 = vadd.f32 %v351, %v97
    %v353 = vadd.f32 %v352, %v98
    %v354 = vadd.f32 %v353, %v99
    %v355 = vadd.f32 %v354, %v100
    %v356 = vadd.f32 %v355, %v101
    %v357 = vadd.f32 %v356, %v102
    %v358 = vadd.f32 %v357, %v103
    %v359 = vadd.f32 %v358, %v104
    %v360 = vadd.f32 %v359, %v105
    %v361 = vadd.f32 %v360, %v106
    %v362 = vadd.f32 %v361, %v107
    %v363 = vadd.f32 %v362, %v108
    %v364 = vadd.f32 %v363, %v109
    %v365 = vadd.f32 %v364, %v110
    %v366 = vadd.f32 %v365, %v111
    %v367 = vadd.f32 %v366, %v112
    %v368 = vadd.f32 %v367, %v113
    %v369 = vadd.f32 %v368, %v114
    %v370 = vadd.f32 %v369, %v115
    %v371 = vadd.f32 %v370, %v116
    %v372 = vadd.f32 %v371, %v117
    %v373 = vadd.f32 %v372, %v118
    %v374 = vadd.f32 %v373, %v119
    %v375 = vadd.f32 %v374, %v120
    %v376 = vadd.f32 %v375, %v121
    %v377 = vadd.f32 %v376, %v122
    %v378 = vadd.f32 %v377, %v123
    %v379 = vadd.f32 %v378, %v124
    %v380 = vadd.f32 %v379, %v125
    %v381 = vadd.f32 %v380, %v126
    %v382 = vadd.f32 %v381, %v127
    %v383 = vadd.f32 %v382, %v128
    %v384 = vadd.f32 %v383, %v129
    %v385 = vadd.f32 %v384, %v130
    %v386 = vadd.f32 %v385, %v131
    %v387 = vadd.f32 %v386, %v132
    %v388 = vadd.f32 %v387, %v133
    %v389 = vadd.f32 %v388, %v134
    %v390 = vadd.f32 %v389, %v135
    %v391 = vadd.f32 %v390, %v136
    %v392 = vadd.f32 %v391, %v137
    %v393 = vadd.f32 %v392, %v138
    %v394 = vadd.f32 %v393, %v139
    %v395 = vadd.f32 %v394, %v140
    %v396 = vadd.f32 %v395, %v141
    %v397 = vadd.f32 %v396, %v142
    %v398 = vadd.f32 %v397, %v143
    %v399 = vadd.f32 %v398, %v144
    %v400 = vadd.f32 %v399, %v145
    %v401 = vadd.f32 %v400, %v146
    %v402 = vadd.f32 %v401, %v147
    %v403 = vadd.f32 %v402, %v148
    %v404 = vadd.f32 %v403, %v149
    %v405 = vadd.f32 %v404, %v150
    %v406 = vadd.f32 %v405, %v151
    %v407 = vadd.f32 %v406, %v152
    %v408 = vadd.f32 %v407, %v153
    %v409 = vadd.f32 %v408, %v154
    %v410 = vadd.f32 %v409, %v155
    %v411 = vadd.f32 %v410, %v156
    %v412 = vadd.f32 %v411, %v157
    %v413 = vadd.f32 %v412, %v158
    %v414 = vadd.f32 %v413, %v159
    %v415 = vadd.f32 %v414, %v160
    %v416 = vadd.f32 %v415, %v161
    %v417 = vadd.f32 %v416, %v162
    %v418 = vadd.f32 %v417, %v163
    %v419 = vadd.f32 %v418, %v164
    %v420 = vadd.f32 %v419, %v165
    %v421 = vadd.f32 %v420, %v166
    %v422 = vadd.f32 %v421, %v167
    %v423 = vadd.f32 %v422, %v168
    %v424 = vadd.f32 %v423, %v169
    %v425 = vadd.f32 %v424, %v170
    %v426 = vadd.f32 %v425, %v171
    %v427 = vadd.f32 %v426, %v172
    %v428 = vadd.f32 %v427, %v173
    %v429 = vadd.f32 %v428, %v174
    %v430 = vadd.f32 %v429, %v175
    %v431 = vadd.f32 %v430, %v176
    %v432 = vadd.f32 %v431, %v177
    %v433 = vadd.f32 %v432, %v178
    %v434 = vadd.f32 %v433, %v179
    %v435 = vadd.f32 %v434, %v180
    %v436 = vadd.f32 %v435, %v181
    %v437 = vadd.f32 %v436, %v182
    %v438 = vadd.f32 %v437, %v183
    %v439 = vadd.f32 %v438, %v184
    %v440 = vadd.f32 %v439, %v185
    %v441 = vadd.f32 %v440, %v186
    %v442 = vadd.f32 %v441, %v187
    %v443 = vadd.f32 %v442, %v188
    %v444 = vadd.f32 %v443, %v189
    %v445 = vadd.f32 %v444, %v190
    %v446 = vadd.f32 %v445, %v191
    %v447 = vadd.f32 %v446, %v192
    %v448 = vadd.f32 %v447, %v193
    %v449 = vadd.f32 %v448, %v194
    %v450 = vadd.f32 %v449, %v195
    %v451 = vadd.f32 %v450, %v196
    %v452 = vadd.f32 %v451, %v197
    %v453 = vadd.f32 %v452, %v198
    %v454 = vadd.f32 %v453, %v199
    %v455 = vadd.f32 %v454, %v200
    %v456 = vadd.f32 %v455, %v201
    %v457 = vadd.f32 %v456, %v202
    %v458 = vadd.f32 %v457, %v203
    %v459 = vadd.f32 %v458, %v204
    %v460 = vadd.f32 %v459, %v205
    %v461 = vadd.f32 %v460, %v206
    %v462 = vadd.f32 %v461, %v207
    %v463 = vadd.f32 %v462, %v208
    %v464 = vadd.f32 %v463, %v209
    %v465 = vadd.f32 %v464, %v210
    %v466 = vadd.f32 %v465, %v211
    %v467 = vadd.f32 %v466, %v212
    %v468 = vadd.f32 %v467, %v213
    %v469 = vadd.f32 %v468, %v214
    %v470 = vadd.f32 %v469, %v215
    %v471 = vadd.f32 %v470, %v216
    %v472 = vadd.f32 %v471, %v217
    %v473 = vadd.f32 %v472, %v218
    %v474 = vadd.f32 %v473, %v219
    %v475 = vadd.f32 %v474, %v220
    %v476 = vadd.f32 %v475, %v221
    %v477 = vadd.f32 %v476, %v222
    %v478 = vadd.f32 %v477, %v223
    %v479 = vadd.f32 %v478, %v224
    %v480 = vadd.f32 %v479, %v225
    %v481 = vadd.f32 %v480, %v226
    %v482 = vadd.f32 %v481, %v227
    %v483 = vadd.f32 %v482, %v228
    %v484 = vadd.f32 %v483, %v229
    %v485 = vadd.f32 %v484, %v230
    %v486 = vadd.f32 %v485, %v231
    %v487 = vadd.f32 %v486, %v232
    %v488 = vadd.f32 %v487, %v233
    %v489 = vadd.f32 %v488, %v234
    %v490 = vadd.f32 %v489, %v235
    %v491 = vadd.f32 %v490, %v236
    %v492 = vadd.f32 %v491, %v237
    %v493 = vadd.f32 %v492, %v238
    %v494 = vadd.f32 %v493, %v239
    %v495 = vadd.f32 %v494, %v240
    %v496 = vadd.f32 %v495, %v241
    %v497 = vadd.f32 %v496, %v242
    %v498 = vadd.f32 %v497, %v243
    %v499 = vadd.f32 %v498, %v244
    %v500 = vadd.f32 %v499, %v245
    %v501 = vadd.f32 %v500, %v246
    %v502 = vadd.f32 %v501, %v247
    %v503 = vadd.f32 %v502, %v248
    %v504 = vadd.f32 %v503, %v249
    %v505 = vadd.f32 %v504, %v250
    %v506 = vadd.f32 %v505, %v251
    %v507 = vadd.f32 %v506, %v252
    %v508 = vadd.f32 %v507, %v253
    %v509 = vadd.f32 %v508, %v254
    %v510 = vadd.f32 %v509, %v255
    %v511 = vadd.f32 %v510, %v256
    %v512 = vadd.f32 %v511, %v257
    %v513 = vadd.f32 %v512, %v258
    %v514 = vadd.f32 %v513, %v259
    %v515 = vadd.f32 %v514, %v260
    %v516 = vadd.f32 %v515, %v261
    %v517 = vadd.f32 %v516, %v262
    %v518 = vadd.f32 %v517, %v263
    %v519 = vadd.f32 %v518, %v264
    %v520 = vadd.f32 %v519, %v265
    %v521 = vadd.f32 %v520, %v266
    %v522 = vadd.f32 %v521, %v267
    %v523 = vadd.f32 %v522, %v268
    %v524 = vadd.f32 %v523, %v269
    %v525 = vadd.f32 %v524, %v270
    %v526 = vadd.f32 %v525, %v271
    %v527 = vadd.f32 %v526, %v272
    %v528 = vadd.f32 %v527, %v273
    %v529 = vadd.f32 %v528, %v274
    %v530 = vadd.f32 %v529, %v275
    %v531 = vadd.f32 %v530, %v276
    %v532 = vadd.f32 %v531, %v277
    %v533 = vadd.f32 %v532, %v278
    %534 = vadd.xlane.f32.xlu0 %v533
    %v535 = vpop.xlane.xlu0 %534
    %v536 = vrot.slane %v535, 4
    %v537 = vadd.f32 %v535, %v536
    %v538 = vrot.slane %v537, 2
    %v539 = vadd.f32 %v537, %v538
    %v540 = vrot.slane %v539, 1
    %v541 = vadd.f32 %v539, %v540
    %s542 = vtos %v541
    %v543 = vrcp.pop 262144.0
    %s544 = vtos %v543
    %s545 = smul.f32 %s542, %s544
    %s546 = ssub.f32 0.0, %s545
    %s547 = scalar_lea.smem [#allocation5], 0
    %548 = sst [smem:[%s547]] %s546
    // Predicated region
    $region10: #{tpu_custom_call.1} parent=1 // pred_check
      _
    $region11: #{tpu_custom_call.1} parent=1 // pred_check_branch
      %550 = sbr.rel (0) target = $region13
    $region12: #{tpu_custom_call.1} parent=1 // pred_region
      %s552 = ssub.s32 16, 16
      %553 = vsyncadd [#allocation4], %s552
      %556 = dma.smem_to_hbm [#allocation5], 16, %s1, [#allocation4]
    $region13: #{tpu_custom_call.1} parent=1 // pred_fallthru
      _
    // Predicated region
    $region14: #{tpu_custom_call.1} parent=1 // pred_check
      _
    $region15: #{tpu_custom_call.1} parent=1 // pred_check_branch
      %558 = sbr.rel (0) target = $region17
    $region16: #{tpu_custom_call.1} parent=1 // pred_region
      %559 = dma.done [#allocation4], 16
    $region17: #{tpu_custom_call.1} parent=1 // pred_fallthru
      _
    %560 = sfence
    %561 = vsyncpa [#allocation3], 1
    %562 = vsyncpa [#allocation4], 1

</llo_original>
